<compile_context>
chip_gen: v7x
topology: tpu7x:2x2x1
jax: 0.10.0
libtpu: 0.0.40
codegen_flags: <defaults>
</compile_context>

<pallas_src>
import jax
import jax.numpy as jnp
from jax.experimental import pallas as pl
from jax.experimental.pallas import tpu as pltpu

DISTORTION_LOSS_MULT = 0.002
INTERLEVEL_LOSS_MULT = 1.0


def _round_up(x: int, m: int) -> int:
    return ((x + m - 1) // m) * m


# ----------------------------------------------------------------------------
# Kernel 1: sum of squared error over lane-dense (rows, 128) slabs.
# Used for rgb_loss and every interlevel MSE pair.
# ----------------------------------------------------------------------------
def _sse_kernel(a_ref, b_ref, o_ref):
    """a_ref, b_ref: (tb, 128) f32 tiles; o_ref: (1, 128) resident accumulator."""
    @pl.when(pl.program_id(0) == 0)
    def _():
        o_ref[...] = jnp.zeros_like(o_ref)

    d = a_ref[...] - b_ref[...]
    # per-lane partial sums; final cross-lane sum happens once in the wrapper
    o_ref[...] += jnp.sum(d * d, axis=0, keepdims=True)


def _sse_pallas(a, b, *, row_tile=512, lane=128):
    """sum((a - b)**2) over all elements, computed in a Pallas reduction."""
    assert a.shape == b.shape, (a.shape, b.shape)
    n = int(a.size)
    af = a.reshape(-1).astype(jnp.float32)
    bf = b.reshape(-1).astype(jnp.float32)

    rows = max(_round_up(n, lane) // lane, 1)
    tb = min(row_tile, _round_up(rows, 8))          # big tiles; >=8 sublanes
    rows_pad = _round_up(rows, tb)
    total = rows_pad * lane
    # zero padding contributes (0-0)^2 = 0 to the sum
    ap = jnp.pad(af, (0, total - n)).reshape(rows_pad, lane)
    bp = jnp.pad(bf, (0, total - n)).reshape(rows_pad, lane)

    partial = pl.pallas_call(
        _sse_kernel,
        out_shape=jax.ShapeDtypeStruct((1, lane), jnp.float32),
        grid=(rows_pad // tb,),
        in_specs=[
            pl.BlockSpec((tb, lane), lambda i: (i, 0)),
            pl.BlockSpec((tb, lane), lambda i: (i, 0)),
        ],
        out_specs=pl.BlockSpec((1, lane), lambda i: (0, 0)),   # resident accumulator
        compiler_params=pltpu.CompilerParams(dimension_semantics=("arbitrary",)),
    )(ap, bp)
    return jnp.sum(partial)


def mse_pallas(a, b):
    return _sse_pallas(a, b) / int(a.size)


# ----------------------------------------------------------------------------
# Kernel 2: distortion loss partial sums.
# Per row (one (ray, k) pair): normalize weights by the per-ray weight sum and
# accumulate sum_s w_norm[s] * intervals[s] into per-lane partials.
# ----------------------------------------------------------------------------
def _distortion_kernel(w_ref, iv_ref, o_ref):
    """w_ref, iv_ref: (tb, S_pad) f32; o_ref: (1, S_pad) resident accumulator."""
    @pl.when(pl.program_id(0) == 0)
    def _():
        o_ref[...] = jnp.zeros_like(o_ref)

    w = w_ref[...]
    iv = iv_ref[...]
    sum_w = jnp.sum(w, axis=-1, keepdims=True)        # (tb, 1) per-ray weight sum
    w_norm = w / (sum_w + 1e-10)                      # padded rows -> 0/(0+eps) = 0
    o_ref[...] += jnp.sum(w_norm * iv, axis=0, keepdims=True)


def distortion_loss_pallas(weights, ray_samples, *, row_tile=256):
    """mean over (*batch, K-1) of sum_s w_norm * intervals (PyTorch broadcast)."""
    assert weights.shape[-1] == 1, "weights expected shape (*batch, num_samples, 1)"
    assert ray_samples.shape[:-1] == weights.shape[:-1]
    S = weights.shape[-2]
    K = ray_samples.shape[-1]
    assert K >= 2
    km1 = K - 1

    w2 = weights.astype(jnp.float32).reshape(-1, S)                       # (N, S)
    intervals = (ray_samples[..., 1:] - ray_samples[..., :-1]).astype(jnp.float32)
    # layout plumbing: materialize the (*,S,1) x (*,S,K-1) broadcast as row
    # replication and put the sample dim on lanes -> plain 2-D lane-major tiles
    iv = jnp.swapaxes(intervals, -1, -2).reshape(-1, S)                   # (N*km1, S)
    w_rep = jnp.repeat(w2, km1, axis=0)                                   # (N*km1, S)

    n_rays = w2.shape[0]
    rows = n_rays * km1
    s_pad = _round_up(S, 128)                       # lane-dense loads/stores
    tb = min(row_tile, _round_up(rows, 8))
    rows_pad = _round_up(rows, tb)
    # zero padding (rows and lanes) contributes exactly 0 to every sum
    w_p = jnp.pad(w_rep, ((0, rows_pad - rows), (0, s_pad - S)))
    iv_p = jnp.pad(iv, ((0, rows_pad - rows), (0, s_pad - S)))

    partial = pl.pallas_call(
        _distortion_kernel,
        out_shape=jax.ShapeDtypeStruct((1, s_pad), jnp.float32),
        grid=(rows_pad // tb,),
        in_specs=[
            pl.BlockSpec((tb, s_pad), lambda i: (i, 0)),
            pl.BlockSpec((tb, s_pad), lambda i: (i, 0)),
        ],
        out_specs=pl.BlockSpec((1, s_pad), lambda i: (0, 0)),   # resident accumulator
        compiler_params=pltpu.CompilerParams(dimension_semantics=("arbitrary",)),
    )(w_p, iv_p)
    return jnp.sum(partial) / (n_rays * km1)


def interlevel_loss_pallas(weights_list):
    if len(weights_list) < 2:
        return jnp.asarray(0.0, jnp.float32)
    loss = jnp.asarray(0.0, jnp.float32)
    for i in range(len(weights_list) - 1):
        wc, wf = weights_list[i], weights_list[i + 1]
        if wc.shape == wf.shape:
            loss = loss + mse_pallas(wc, wf)
    return loss / (len(weights_list) - 1)


# ----------------------------------------------------------------------------
# Module wrapper: NerfactoLoss.forward
# ----------------------------------------------------------------------------
def nerfacto_loss(outputs, batch, *,
                  distortion_loss_mult=DISTORTION_LOSS_MULT,
                  interlevel_loss_mult=INTERLEVEL_LOSS_MULT):
    losses = {}
    losses["rgb_loss"] = mse_pallas(outputs["rgb"], batch["image"])
    if "ray_samples" in outputs and "weights" in outputs:
        # mid_points is computed in the PyTorch forward but never used by
        # _compute_distortion_loss, so it is omitted here (dead code).
        losses["distortion_loss"] = distortion_loss_mult * distortion_loss_pallas(
            outputs["weights"], outputs["ray_samples"])
    if "weights_list" in outputs and "ray_samples_list" in outputs:
        losses["interlevel_loss"] = interlevel_loss_mult * interlevel_loss_pallas(
            outputs["weights_list"])
    losses["total_loss"] = sum(losses.values())
    return losses


# ----------------------------------------------------------------------------
# Pure-JAX reference (mirrors the PyTorch forward op-by-op, incl. broadcasting)
# ----------------------------------------------------------------------------
def nerfacto_loss_ref(outputs, batch, *,
                      distortion_loss_mult=DISTORTION_LOSS_MULT,
                      interlevel_loss_mult=INTERLEVEL_LOSS_MULT):
    losses = {}
    pred = outputs["rgb"].astype(jnp.float32)
    tgt = batch["image"].astype(jnp.float32)
    losses["rgb_loss"] = jnp.mean((pred - tgt) ** 2)
    if "ray_samples" in outputs and "weights" in outputs:
        rs = outputs["ray_samples"].astype(jnp.float32)
        w = outputs["weights"].astype(jnp.float32)
        intervals = rs[..., 1:] - rs[..., :-1]
        w_norm = w / (jnp.sum(w, axis=-2, keepdims=True) + 1e-10)
        losses["distortion_loss"] = distortion_loss_mult * jnp.mean(
            jnp.sum(w_norm * intervals, axis=-2))
    if "weights_list" in outputs and "ray_samples_list" in outputs:
        wl = outputs["weights_list"]
        il = jnp.asarray(0.0, jnp.float32)
        if len(wl) >= 2:
            for i in range(len(wl) - 1):
                if wl[i].shape == wl[i + 1].shape:
                    il = il + jnp.mean((wl[i].astype(jnp.float32)
                                        - wl[i + 1].astype(jnp.float32)) ** 2)
            il = il / (len(wl) - 1)
        losses["interlevel_loss"] = interlevel_loss_mult * il
    losses["total_loss"] = sum(losses.values())
    return losses


if __name__ == "__main__":
    key = jax.random.PRNGKey(0)
    k1, k2, k3, k4, k5, k6 = jax.random.split(key, 6)

    batch_shape = (4, 32)   # 128 rays (small demo)
    S = 32                  # num_samples (config default 192; small here)
    K = 3                   # ray_samples last dim (3-D sample positions)

    rgb_pred = jax.random.uniform(k1, (*batch_shape, 3), dtype=jnp.float32)
    rgb_gt = jax.random.uniform(k2, (*batch_shape, 3), dtype=jnp.float32)
    weights = jax.random.uniform(k3, (*batch_shape, S, 1), dtype=jnp.float32)
    ray_samples = jax.random.uniform(k4, (*batch_shape, S, K), dtype=jnp.float32)
    w_coarse = jax.random.uniform(k5, (*batch_shape, S, 1), dtype=jnp.float32)
    w_fine = jax.random.uniform(k6, (*batch_shape, S, 1), dtype=jnp.float32)

    outputs = {
        "rgb": rgb_pred,
        "ray_samples": ray_samples,
        "weights": weights,
        "weights_list": [w_coarse, w_fine],
        "ray_samples_list": [ray_samples, ray_samples],
    }
    batch = {"image": rgb_gt}

    losses = nerfacto_loss(outputs, batch)
    losses = jax.block_until_ready(losses)

    ref = nerfacto_loss_ref(outputs, batch)
    for name in ("rgb_loss", "distortion_loss", "interlevel_loss", "total_loss"):
        got, want = losses[name], ref[name]
        assert jnp.allclose(got, want, rtol=1e-4, atol=1e-6), (name, got, want)

    print("KERNEL_OK")
</pallas_src>

<mosaic_0001>
module attributes {stable_mosaic.version = 11 : i64} {
  func.func @_sse_kernel(%arg0: i32, %arg1: memref<8x128xf32, #tpu.memory_space<vmem>>, %arg2: memref<8x128xf32, #tpu.memory_space<vmem>>, %arg3: memref<1x128xf32, #tpu.memory_space<vmem>>) attributes {dimension_semantics = [#tpu.dimension_semantics<arbitrary>], iteration_bounds = array<i64: 1>, scalar_prefetch = 0 : i64, scratch_operands = 0 : i64, tpu.core_type = #tpu.core_type<tc>, window_params = [{transform_indices = @transform_0, window_bounds = array<i64: 8, 128>}, {transform_indices = @transform_1, window_bounds = array<i64: 8, 128>}, {pipeline_mode = #tpu.pipeline_mode<synchronous>, transform_indices = @transform_2, window_bounds = array<i64: 1, 128>}]} {
    %c0_i32 = arith.constant 0 : i32
    %0 = arith.cmpi eq, %arg0, %c0_i32 : i32
    %1 = arith.extui %0 : i1 to i32
    %c0_i32_0 = arith.constant 0 : i32
    %2 = arith.cmpi ne, %1, %c0_i32_0 : i32
    scf.if %2 {
      %cst_8 = arith.constant 0.000000e+00 : f32
      %12 = vector.broadcast %cst_8 : f32 to vector<1x128xf32>
      %c0_9 = arith.constant 0 : index
      %c0_10 = arith.constant 0 : index
      %13 = vector.load %arg3[%c0_9, %c0_10] : memref<1x128xf32, #tpu.memory_space<vmem>>, vector<1x128xf32>
      tpu.vector_store %arg3[%c0_9, %c0_10], %12 {strides = array<i32>} : memref<1x128xf32, #tpu.memory_space<vmem>>, vector<1x128xf32>,
    } else {
    }
    %c0 = arith.constant 0 : index
    %c0_1 = arith.constant 0 : index
    %3 = vector.load %arg1[%c0, %c0_1] : memref<8x128xf32, #tpu.memory_space<vmem>>, vector<8x128xf32>
    %c0_2 = arith.constant 0 : index
    %c0_3 = arith.constant 0 : index
    %4 = vector.load %arg2[%c0_2, %c0_3] : memref<8x128xf32, #tpu.memory_space<vmem>>, vector<8x128xf32>
    %5 = arith.subf %3, %4 : vector<8x128xf32>
    %c0_4 = arith.constant 0 : index
    %c0_5 = arith.constant 0 : index
    %6 = vector.load %arg3[%c0_4, %c0_5] : memref<1x128xf32, #tpu.memory_space<vmem>>, vector<1x128xf32>
    %7 = arith.mulf %5, %5 : vector<8x128xf32>
    %cst = arith.constant dense<0.000000e+00> : vector<128xf32>
    %8 = vector.multi_reduction <add>, %7, %cst [0] : vector<8x128xf32> to vector<128xf32>
    %9 = vector.shape_cast %8 : vector<128xf32> to vector<1x128xf32>
    %10 = arith.addf %6, %9 : vector<1x128xf32>
    %c0_6 = arith.constant 0 : index
    %c0_7 = arith.constant 0 : index
    %11 = vector.load %arg3[%c0_6, %c0_7] : memref<1x128xf32, #tpu.memory_space<vmem>>, vector<1x128xf32>
    tpu.vector_store %arg3[%c0_6, %c0_7], %10 {strides = array<i32>} : memref<1x128xf32, #tpu.memory_space<vmem>>, vector<1x128xf32>,
    return
  }
  func.func @transform_0(%arg0: i32) -> (i32, i32) {
    %c0_i32 = arith.constant 0 : i32
    %c0_i32_0 = arith.constant 0 : i32
    return %arg0, %c0_i32 : i32, i32
  }
  func.func @transform_1(%arg0: i32) -> (i32, i32) {
    %c0_i32 = arith.constant 0 : i32
    %c0_i32_0 = arith.constant 0 : i32
    return %arg0, %c0_i32 : i32, i32
  }
  func.func @transform_2(%arg0: i32) -> (i32, i32) {
    %c0_i32 = arith.constant 0 : i32
    %c0_i32_0 = arith.constant 0 : i32
    %c0_i32_1 = arith.constant 0 : i32
    return %c0_i32, %c0_i32_0 : i32, i32
  }
}

</mosaic_0001>

<llo_original>
// kernel: tpu_custom_call.1
$region0: #{tpu_custom_call.1}
  #allocation0 [shape = 'u32[]', space=smem, size = 0x4, offset = 0x4, fixed_abs, tag = 'smem constant byte address 0x4 - core index']
  #allocation1 [shape = 'u32[144,128]{1,0:T(1,128)}', space=vmem, size = 0x12000, scoped, tag = 'internal scratch']
  %s0 = inlined_call_operand.hbm [shape: f32[8,128], index: 0, kind: input, shape index: {}]
  %s1 = inlined_call_operand.hbm [shape: f32[8,128], index: 1, kind: input, shape index: {}]
  %s2 = inlined_call_operand.hbm [shape: f32[1,128], index: 2, kind: output, shape index: {}]
  %s3 = sld [smem:[#allocation0]]
  $region30: #{tpu_custom_call.1} parent=0
    _
  %s5 = ssub.s32 1, %s3
  %s6 = scalar_select 0, %s5, %s3
  $region1: #{tpu_custom_call.1} parent=0
    #allocation2 [shape = 'u8[4096]{0}', space=vmem, size = 0x1000, scoped, tag = 'input window, operand 0, single buffered']
    #allocation3 [shape = 's32[1]{0}', space=sflag, size = 0x4, scoped, tag = 'scoped memory for tpu_custom_call.1']
    #allocation4 [shape = 's32[1]{0}', space=sflag, size = 0x4, scoped, tag = 'scoped memory for tpu_custom_call.1']
    #allocation5 [shape = 'u8[4096]{0}', space=vmem, size = 0x1000, scoped, tag = 'input window, operand 1, single buffered']
    #allocation6 [shape = 's32[1]{0}', space=sflag, size = 0x4, scoped, tag = 'scoped memory for tpu_custom_call.1']
    #allocation7 [shape = 'u8[512]{0}', space=vmem, size = 0x400, scoped, tag = 'output window, operand 0, single buffered']
    %7 = vsyncpa [#allocation3], 0
    %8 = vsyncpa [#allocation6], 0
    %9 = vsyncpa [#allocation4], 0
    // Predicated region
    $region2: #{tpu_custom_call.1} parent=1 // pred_check
      _
    $region3: #{tpu_custom_call.1} parent=1 // pred_check_branch
      %11 = sbr.rel (0) target = $region5
    $region4: #{tpu_custom_call.1} parent=1 // pred_region
      %s13 = ssub.s32 128, 128
      %14 = vsyncadd [#allocation3], %s13
      %s16 = sshll.u32 [#allocation2], 4
      %s17 = int_to_ptr.vmem [resolvable:$true] %s16
      %19 = dma.hbm_to_vmem [thread:$0]  %s0, 128, %s17, [#allocation3]
    $region5: #{tpu_custom_call.1} parent=1 // pred_fallthru
      _
    // Predicated region
    $region6: #{tpu_custom_call.1} parent=1 // pred_check
      _
    $region7: #{tpu_custom_call.1} parent=1 // pred_check_branch
      %21 = sbr.rel (0) target = $region9
    $region8: #{tpu_custom_call.1} parent=1 // pred_region
      %s23 = ssub.s32 128, 128
      %24 = vsyncadd [#allocation6], %s23
      %s26 = sshll.u32 [#allocation5], 4
      %s27 = int_to_ptr.vmem [resolvable:$true] %s26
      %29 = dma.hbm_to_vmem [thread:$0]  %s1, 128, %s27, [#allocation6]
    $region9: #{tpu_custom_call.1} parent=1 // pred_fallthru
      _
    // Predicated region
    $region10: #{tpu_custom_call.1} parent=1 // pred_check
      _
    $region11: #{tpu_custom_call.1} parent=1 // pred_check_branch
      %31 = sbr.rel (0) target = $region13
    $region12: #{tpu_custom_call.1} parent=1 // pred_region
      %32 = dma.done [#allocation3], 128
    $region13: #{tpu_custom_call.1} parent=1 // pred_fallthru
      _
    // Predicated region
    $region14: #{tpu_custom_call.1} parent=1 // pred_check
      _
    $region15: #{tpu_custom_call.1} parent=1 // pred_check_branch
      %34 = sbr.rel (0) target = $region17
    $region16: #{tpu_custom_call.1} parent=1 // pred_region
      %35 = dma.done [#allocation6], 128
    $region17: #{tpu_custom_call.1} parent=1 // pred_fallthru
      _
    %p36 = scmp.eq.s32.totalorder 0, 0
    // Predicated region
    $region18: #{tpu_custom_call.1} parent=1 // pred_check
      %p37 = pneg %p36
    $region19: #{tpu_custom_call.1} parent=1 // pred_check_branch
      %39 = sbr.rel (%p37) target = $region21
    $region20: #{tpu_custom_call.1} parent=1 // pred_region
      %40 = vst [vmem:[#allocation7] sm:$0x1] 0.0
    $region21: #{tpu_custom_call.1} parent=1 // pred_fallthru
      _
    %v41 = vld [vmem:[#allocation2] sm:$0xff]
    %v42 = vld [vmem:[#allocation5] sm:$0xff]
    %v43 = vsub.f32 %v41, %v42
    %v44 = vld [vmem:[#allocation7] sm:$0x1]
    %v45 = vmul.f32 %v43, %v43
    %v46 = vrot.slane %v45, 4
    %v47 = vadd.f32 %v45, %v46
    %v48 = vrot.slane %v47, 2
    %v49 = vadd.f32 %v47, %v48
    %v50 = vrot.slane %v49, 1
    %v51 = vadd.f32 %v49, %v50
    %v52 = vadd.f32 %v44, %v51
    %53 = vst [vmem:[#allocation7] sm:$0x1] %v52
    // Predicated region
    $region22: #{tpu_custom_call.1} parent=1 // pred_check
      _
    $region23: #{tpu_custom_call.1} parent=1 // pred_check_branch
      %55 = sbr.rel (0) target = $region25
    $region24: #{tpu_custom_call.1} parent=1 // pred_region
      %s57 = ssub.s32 16, 16
      %58 = vsyncadd [#allocation4], %s57
      %s60 = sshll.u32 [#allocation7], 4
      %s61 = int_to_ptr.vmem [resolvable:$true] %s60
      %63 = dma.vmem_to_hbm [thread:$0]  %s61, 16, %s2, [#allocation4]
    $region25: #{tpu_custom_call.1} parent=1 // pred_fallthru
      _
    // Predicated region
    $region26: #{tpu_custom_call.1} parent=1 // pred_check
      _
    $region27: #{tpu_custom_call.1} parent=1 // pred_check_branch
      %65 = sbr.rel (0) target = $region29
    $region28: #{tpu_custom_call.1} parent=1 // pred_region
      %66 = dma.done [#allocation4], 16
    $region29: #{tpu_custom_call.1} parent=1 // pred_fallthru
      _
    %67 = vsyncpa [#allocation3], 1
    %68 = vsyncpa [#allocation6], 1
    %69 = vsyncpa [#allocation4], 1

</llo_original>
